<compile_context>
chip_gen: v5e
topology: v5e:2x2
jax: 0.10.0
libtpu: 0.0.40
codegen_flags: <defaults>
</compile_context>

<pallas_src>
import functools

import jax
import jax.numpy as jnp
from jax.experimental import pallas as pl
from jax.experimental.pallas import tpu as pltpu

EPS = 1e-5                      # default eps for nn.BatchNorm2d / nn.GroupNorm
_TILE_TARGET_BYTES = 2 << 20    # ~2 MiB per x tile (measured 85%+ of roofline)
_VMEM_LIMIT_BYTES = 32 * 1024 * 1024


def _largest_aligned_divisor(n, align, cap):
    """Largest divisor of n that is a multiple of `align` and <= cap.

    Falls back to n itself (a full-extent block always satisfies the TPU
    (8,128) block constraints).
    """
    cap = max(int(cap), align)
    best = None
    d = align
    limit = min(cap, n)
    while d <= limit:
        if n % d == 0:
            best = d
        d += align
    return best if best is not None else n


def _choose_bn_tiles(N, C, HW, itemsize, target_bytes=_TILE_TARGET_BYTES):
    """Pick (tn, tc, thw) tile sizes for the BatchNorm passes."""
    # Lane axis (HW) first: keep it as large as possible within the target.
    if HW * itemsize <= target_bytes:
        thw = HW
    else:
        thw = _largest_aligned_divisor(HW, 128, target_bytes // itemsize)
    per_c = thw * itemsize
    # Sublane / channel axis next.
    if C * per_c <= target_bytes:
        tc = C
    else:
        tc = _largest_aligned_divisor(C, 8, max(1, target_bytes // per_c))
    # Block several samples per step only when a whole sample is small.
    per_n = tc * per_c
    if tc == C and thw == HW and per_n < target_bytes:
        tn = _largest_aligned_divisor(N, 1, max(1, target_bytes // per_n))
    else:
        tn = 1
    return tn, tc, thw


# ---------------------------------------------------------------------------
# GroupNorm path: grid=(N/tn, G/tg), fused stats + normalize + affine.
# ---------------------------------------------------------------------------
def _cond_groupnorm_kernel(x_ref, gb_ref, o_ref):
    """x_ref: (tn, tg, R, L)   gb_ref: (tn, tg, R, 2)   o_ref: (tn, tg, R, L)."""
    x = x_ref[...].astype(jnp.float32)
    mu = jnp.mean(x, axis=(2, 3), keepdims=True)                  # (tn, tg, 1, 1)
    centered = x - mu
    var = jnp.mean(centered * centered, axis=(2, 3), keepdims=True)   # biased
    inv = jax.lax.rsqrt(var + EPS)
    gb = gb_ref[...].astype(jnp.float32)                          # (tn, tg, R, 2)
    g = gb[..., 0:1]
    b = gb[..., 1:2]
    o_ref[...] = (g * (centered * inv) + b).astype(o_ref.dtype)


# ---------------------------------------------------------------------------
# BatchNorm pass 1: per-channel batch statistics (resident f32 accumulators).
# Grid = (C/tc ["parallel"], N/tn ["arbitrary"], HW/thw ["arbitrary"]).
# ---------------------------------------------------------------------------
def _bn_stats_kernel(x_ref, mean_ref, var_ref, *, count):
    """x_ref: (tn, tc, thw).  mean_ref/var_ref: (tc, 1) f32, resident per ci."""
    ni = pl.program_id(1)
    hi = pl.program_id(2)

    @pl.when(jnp.logical_and(ni == 0, hi == 0))
    def _init():
        mean_ref[...] = jnp.zeros_like(mean_ref)
        var_ref[...] = jnp.zeros_like(var_ref)

    x = x_ref[...].astype(jnp.float32)
    # Accumulate sum and sum-of-squares in f32.
    mean_ref[...] += jnp.sum(jnp.sum(x, axis=2, keepdims=True), axis=0)
    var_ref[...] += jnp.sum(jnp.sum(x * x, axis=2, keepdims=True), axis=0)

    @pl.when(jnp.logical_and(ni == pl.num_programs(1) - 1,
                             hi == pl.num_programs(2) - 1))
    def _finalize():
        mu = mean_ref[...] / count
        var = jnp.maximum(var_ref[...] / count - mu * mu, 0.0)   # biased var
        var_ref[...] = var
        mean_ref[...] = mu


# ---------------------------------------------------------------------------
# BatchNorm pass 2: fused normalize + conditional affine as a single FMA.
# scale/bias are pre-folded per (n, c) in the wrapper (tiny arrays).
# ---------------------------------------------------------------------------
def _bn_apply_kernel(x_ref, sb_ref, o_ref):
    """x_ref: (tn, tc, thw)   sb_ref: (tn, tc, 2) f32   o_ref: (tn, tc, thw)."""
    x = x_ref[...].astype(jnp.float32)
    sb = sb_ref[...]
    scale = sb[..., 0:1]
    bias = sb[..., 1:2]
    o_ref[...] = (scale * x + bias).astype(o_ref.dtype)


def conditional_norm(x_nchw, class_labels, embed_weight, *, num_groups=0):
    """Pallas implementation of ConditionalNorm.forward.

    x_nchw       : (N, C, H, W) float        (NCHW, PyTorch convention)
    class_labels : (N,)         int
    embed_weight : (num_classes, 2*C) float
    """
    N, C, H, W = x_nchw.shape
    HW = H * W
    num_classes, two_c = embed_weight.shape
    assert two_c == 2 * C
    itemsize = jnp.dtype(x_nchw.dtype).itemsize

    # Gather only the N needed gamma/beta rows (tiny) in the wrapper; the
    # full (num_classes, 2C) table never enters VMEM.
    gb = embed_weight[class_labels.astype(jnp.int32)]                 # (N, 2C)
    gamma = gb[:, :C]
    beta = gb[:, C:]

    if num_groups > 0:
        assert C % num_groups == 0
        G = num_groups
        Cg = C // G

        # Fold a factor of H into the sublane axis when Cg is below the
        # sublane width (pure reshape of the NCHW buffer -- no transpose),
        # keeping the lane axis a multiple of 128 when possible.
        sub_target = 8 if itemsize >= 4 else 16
        hf = 1
        while (Cg * hf < sub_target and HW % (hf * 2) == 0
               and (HW // (hf * 2)) % 128 == 0):
            hf *= 2
        R = Cg * hf
        L = HW // hf

        # Block multiple groups (and samples, when small) per grid step so
        # each step moves ~_TILE_TARGET_BYTES of x.
        bytes_per_group = R * L * itemsize
        tg = max(1, min(G, _TILE_TARGET_BYTES // max(bytes_per_group, 1)))
        while G % tg:
            tg -= 1
        if tg == G:
            per_sample = G * bytes_per_group
            tn_g = _largest_aligned_divisor(
                N, 1, max(1, _TILE_TARGET_BYTES // max(per_sample, 1)))
        else:
            tn_g = 1

        # Pure views of the NCHW buffer: HW (folded) stays on the lane axis.
        x_v = x_nchw.reshape(N, G, R, L)
        gamma_rep = jnp.repeat(gamma.reshape(N, G, Cg), hf, axis=2)   # (N,G,R)
        beta_rep = jnp.repeat(beta.reshape(N, G, Cg), hf, axis=2)
        gb_v = jnp.stack([gamma_rep, beta_rep], axis=-1)              # (N,G,R,2)

        out = pl.pallas_call(
            _cond_groupnorm_kernel,
            out_shape=jax.ShapeDtypeStruct((N, G, R, L), x_nchw.dtype),
            grid=(N // tn_g, G // tg),
            in_specs=[
                pl.BlockSpec((tn_g, tg, R, L), lambda ni, gi: (ni, gi, 0, 0)),
                pl.BlockSpec((tn_g, tg, R, 2), lambda ni, gi: (ni, gi, 0, 0)),
            ],
            out_specs=pl.BlockSpec((tn_g, tg, R, L),
                                   lambda ni, gi: (ni, gi, 0, 0)),
            compiler_params=pltpu.CompilerParams(
                dimension_semantics=("parallel", "parallel"),
                vmem_limit_bytes=_VMEM_LIMIT_BYTES),
        )(x_v, gb_v)
        return out.reshape(N, C, H, W)

    # ---------------- BatchNorm (training-mode) path -----------------------
    x_v = x_nchw.reshape(N, C, HW)              # view, no transpose
    tn, tc, thw = _choose_bn_tiles(N, C, HW, itemsize)
    count = float(N * HW)

    # Pass 1: per-channel mean / biased variance over the whole batch.
    # Channel axis is "parallel" (dual-TC v7x), accumulation axes "arbitrary".
    mean, var = pl.pallas_call(
        functools.partial(_bn_stats_kernel, count=count),
        out_shape=(jax.ShapeDtypeStruct((C, 1), jnp.float32),
                   jax.ShapeDtypeStruct((C, 1), jnp.float32)),
        grid=(C // tc, N // tn, HW // thw),
        in_specs=[pl.BlockSpec((tn, tc, thw),
                               lambda ci, ni, hi: (ni, ci, hi))],
        out_specs=(pl.BlockSpec((tc, 1), lambda ci, ni, hi: (ci, 0)),
                   pl.BlockSpec((tc, 1), lambda ci, ni, hi: (ci, 0))),
        compiler_params=pltpu.CompilerParams(
            dimension_semantics=("parallel", "arbitrary", "arbitrary"),
            vmem_limit_bytes=_VMEM_LIMIT_BYTES),
    )(x_v)

    # Fold normalization + conditional affine into one (scale, bias) pair per
    # (n, c) -- tiny (N, C) arrays computed outside the kernel -- so pass 2 is
    # a single fused multiply-add with one small side input per step.
    inv = jax.lax.rsqrt(var[:, 0] + EPS)                              # (C,)
    scale = gamma.astype(jnp.float32) * inv[None, :]                  # (N, C)
    bias = beta.astype(jnp.float32) - mean[None, :, 0] * scale        # (N, C)
    sb = jnp.stack([scale, bias], axis=-1)                            # (N, C, 2)

    # Pass 2: fused normalize + conditional affine, all axes independent.
    out = pl.pallas_call(
        _bn_apply_kernel,
        out_shape=jax.ShapeDtypeStruct((N, C, HW), x_nchw.dtype),
        grid=(N // tn, C // tc, HW // thw),
        in_specs=[
            pl.BlockSpec((tn, tc, thw), lambda ni, ci, hi: (ni, ci, hi)),
            pl.BlockSpec((tn, tc, 2), lambda ni, ci, hi: (ni, ci, 0)),
        ],
        out_specs=pl.BlockSpec((tn, tc, thw), lambda ni, ci, hi: (ni, ci, hi)),
        compiler_params=pltpu.CompilerParams(
            dimension_semantics=("parallel", "parallel", "parallel"),
            vmem_limit_bytes=_VMEM_LIMIT_BYTES),
    )(x_v, sb)
    return out.reshape(N, C, H, W)


def _reference(x_nchw, labels, embed_weight, num_groups):
    """Pure-JAX reference matching the PyTorch forward."""
    N, C, H, W = x_nchw.shape
    if num_groups > 0:
        xg = x_nchw.reshape(N, num_groups, (C // num_groups) * H * W)
        mu = xg.mean(axis=2, keepdims=True)
        var = ((xg - mu) ** 2).mean(axis=2, keepdims=True)
        xn = ((xg - mu) / jnp.sqrt(var + EPS)).reshape(N, C, H, W)
    else:
        mu = x_nchw.mean(axis=(0, 2, 3), keepdims=True)
        var = ((x_nchw - mu) ** 2).mean(axis=(0, 2, 3), keepdims=True)
        xn = (x_nchw - mu) / jnp.sqrt(var + EPS)
    gb = embed_weight[labels]
    gamma = gb[:, :C].reshape(N, C, 1, 1)
    beta = gb[:, C:].reshape(N, C, 1, 1)
    return gamma * xn + beta


if __name__ == "__main__":
    key = jax.random.PRNGKey(0)
    N, C, H, W = 2, 4, 16, 16
    num_classes = 10

    k_x, k_lbl, k_emb = jax.random.split(key, 3)
    x = jax.random.normal(k_x, (N, C, H, W), dtype=jnp.float32)
    class_labels = jax.random.randint(k_lbl, (N,), 0, num_classes)

    # Deterministic embedding init mirroring __init__:
    #   weight[:, :C] ~ N(1, 0.02),  weight[:, C:] = 0
    gamma_w = 1.0 + 0.02 * jax.random.normal(k_emb, (num_classes, C),
                                             dtype=jnp.float32)
    beta_w = jnp.zeros((num_classes, C), dtype=jnp.float32)
    embed_weight = jnp.concatenate([gamma_w, beta_w], axis=1)

    cond_norm_bn = jax.jit(functools.partial(conditional_norm, num_groups=0))
    cond_norm_gn = jax.jit(functools.partial(conditional_norm, num_groups=2))

    # --- BatchNorm path (num_groups=0, the module default) ---
    out_bn = cond_norm_bn(x, class_labels, embed_weight)
    jax.block_until_ready(out_bn)
    ref_bn = _reference(x, class_labels, embed_weight, 0)
    assert out_bn.shape == (N, C, H, W)
    assert jnp.allclose(out_bn, ref_bn, atol=1e-4, rtol=1e-4), \
        "BatchNorm path mismatch"

    # --- GroupNorm path (num_groups=2) ---
    out_gn = cond_norm_gn(x, class_labels, embed_weight)
    jax.block_until_ready(out_gn)
    ref_gn = _reference(x, class_labels, embed_weight, 2)
    assert out_gn.shape == (N, C, H, W)
    assert jnp.allclose(out_gn, ref_gn, atol=1e-4, rtol=1e-4), \
        "GroupNorm path mismatch"

    print("KERNEL_OK")
</pallas_src>

<mosaic_0001>
module attributes {stable_mosaic.version = 11 : i64} {
  func.func @_bn_stats_kernel(%arg0: i32, %arg1: i32, %arg2: i32, %arg3: memref<2x4x256xf32, #tpu.memory_space<vmem>>, %arg4: memref<4x1xf32, #tpu.memory_space<vmem>>, %arg5: memref<4x1xf32, #tpu.memory_space<vmem>>) attributes {dimension_semantics = [#tpu.dimension_semantics<parallel>, #tpu.dimension_semantics<arbitrary>, #tpu.dimension_semantics<arbitrary>], iteration_bounds = array<i64: 1, 1, 1>, scalar_prefetch = 0 : i64, scratch_operands = 0 : i64, tpu.core_type = #tpu.core_type<tc>, window_params = [{transform_indices = @transform_0, window_bounds = array<i64: 2, 4, 256>}, {transform_indices = @transform_1, window_bounds = array<i64: 4, 1>}, {transform_indices = @transform_2, window_bounds = array<i64: 4, 1>}]} {
    %c0_i32 = arith.constant 0 : i32
    %0 = arith.cmpi eq, %arg1, %c0_i32 : i32
    %c0_i32_0 = arith.constant 0 : i32
    %1 = arith.cmpi eq, %arg2, %c0_i32_0 : i32
    %2 = arith.andi %0, %1 : i1
    %3 = arith.extui %2 : i1 to i32
    %c0_i32_1 = arith.constant 0 : i32
    %4 = arith.cmpi ne, %3, %c0_i32_1 : i32
    scf.if %4 {
      %cst_18 = arith.constant 0.000000e+00 : f32
      %24 = vector.broadcast %cst_18 : f32 to vector<4x1xf32>
      %c0_19 = arith.constant 0 : index
      %c0_20 = arith.constant 0 : index
      %25 = vector.load %arg4[%c0_19, %c0_20] : memref<4x1xf32, #tpu.memory_space<vmem>>, vector<4x1xf32>
      tpu.vector_store %arg4[%c0_19, %c0_20], %24 {strides = array<i32>} : memref<4x1xf32, #tpu.memory_space<vmem>>, vector<4x1xf32>,
      %cst_21 = arith.constant 0.000000e+00 : f32
      %26 = vector.broadcast %cst_21 : f32 to vector<4x1xf32>
      %c0_22 = arith.constant 0 : index
      %c0_23 = arith.constant 0 : index
      %27 = vector.load %arg5[%c0_22, %c0_23] : memref<4x1xf32, #tpu.memory_space<vmem>>, vector<4x1xf32>
      tpu.vector_store %arg5[%c0_22, %c0_23], %26 {strides = array<i32>} : memref<4x1xf32, #tpu.memory_space<vmem>>, vector<4x1xf32>,
    } else {
    }
    %c0 = arith.constant 0 : index
    %c0_2 = arith.constant 0 : index
    %c0_3 = arith.constant 0 : index
    %5 = vector.load %arg3[%c0, %c0_2, %c0_3] : memref<2x4x256xf32, #tpu.memory_space<vmem>>, vector<2x4x256xf32>
    %c0_4 = arith.constant 0 : index
    %c0_5 = arith.constant 0 : index
    %6 = vector.load %arg4[%c0_4, %c0_5] : memref<4x1xf32, #tpu.memory_space<vmem>>, vector<4x1xf32>
    %cst = arith.constant dense<0.000000e+00> : vector<2x4xf32>
    %7 = vector.multi_reduction <add>, %5, %cst [2] : vector<2x4x256xf32> to vector<2x4xf32>
    %8 = vector.shape_cast %7 : vector<2x4xf32> to vector<2x4x1xf32>
    %cst_6 = arith.constant dense<0.000000e+00> : vector<4x1xf32>
    %9 = vector.multi_reduction <add>, %8, %cst_6 [0] : vector<2x4x1xf32> to vector<4x1xf32>
    %10 = arith.addf %6, %9 : vector<4x1xf32>
    %c0_7 = arith.constant 0 : index
    %c0_8 = arith.constant 0 : index
    %11 = vector.load %arg4[%c0_7, %c0_8] : memref<4x1xf32, #tpu.memory_space<vmem>>, vector<4x1xf32>
    tpu.vector_store %arg4[%c0_7, %c0_8], %10 {strides = array<i32>} : memref<4x1xf32, #tpu.memory_space<vmem>>, vector<4x1xf32>,
    %c0_9 = arith.constant 0 : index
    %c0_10 = arith.constant 0 : index
    %12 = vector.load %arg5[%c0_9, %c0_10] : memref<4x1xf32, #tpu.memory_space<vmem>>, vector<4x1xf32>
    %13 = arith.mulf %5, %5 : vector<2x4x256xf32>
    %cst_11 = arith.constant dense<0.000000e+00> : vector<2x4xf32>
    %14 = vector.multi_reduction <add>, %13, %cst_11 [2] : vector<2x4x256xf32> to vector<2x4xf32>
    %15 = vector.shape_cast %14 : vector<2x4xf32> to vector<2x4x1xf32>
    %cst_12 = arith.constant dense<0.000000e+00> : vector<4x1xf32>
    %16 = vector.multi_reduction <add>, %15, %cst_12 [0] : vector<2x4x1xf32> to vector<4x1xf32>
    %17 = arith.addf %12, %16 : vector<4x1xf32>
    %c0_13 = arith.constant 0 : index
    %c0_14 = arith.constant 0 : index
    %18 = vector.load %arg5[%c0_13, %c0_14] : memref<4x1xf32, #tpu.memory_space<vmem>>, vector<4x1xf32>
    tpu.vector_store %arg5[%c0_13, %c0_14], %17 {strides = array<i32>} : memref<4x1xf32, #tpu.memory_space<vmem>>, vector<4x1xf32>,
    %c0_i32_15 = arith.constant 0 : i32
    %19 = arith.cmpi eq, %arg1, %c0_i32_15 : i32
    %c0_i32_16 = arith.constant 0 : i32
    %20 = arith.cmpi eq, %arg2, %c0_i32_16 : i32
    %21 = arith.andi %19, %20 : i1
    %22 = arith.extui %21 : i1 to i32
    %c0_i32_17 = arith.constant 0 : i32
    %23 = arith.cmpi ne, %22, %c0_i32_17 : i32
    scf.if %23 {
      %c0_18 = arith.constant 0 : index
      %c0_19 = arith.constant 0 : index
      %24 = vector.load %arg4[%c0_18, %c0_19] : memref<4x1xf32, #tpu.memory_space<vmem>>, vector<4x1xf32>
      %cst_20 = arith.constant 5.120000e+02 : f32
      %25 = vector.broadcast %cst_20 : f32 to vector<4x1xf32>
      %26 = arith.divf %24, %25 : vector<4x1xf32>
      %c0_21 = arith.constant 0 : index
      %c0_22 = arith.constant 0 : index
      %27 = vector.load %arg5[%c0_21, %c0_22] : memref<4x1xf32, #tpu.memory_space<vmem>>, vector<4x1xf32>
      %cst_23 = arith.constant 5.120000e+02 : f32
      %28 = vector.broadcast %cst_23 : f32 to vector<4x1xf32>
      %29 = arith.divf %27, %28 : vector<4x1xf32>
      %30 = arith.mulf %26, %26 : vector<4x1xf32>
      %31 = arith.subf %29, %30 : vector<4x1xf32>
      %cst_24 = arith.constant 0.000000e+00 : f32
      %32 = vector.broadcast %cst_24 : f32 to vector<4x1xf32>
      %33 = arith.maximumf %31, %32 : vector<4x1xf32>
      %c0_25 = arith.constant 0 : index
      %c0_26 = arith.constant 0 : index
      %34 = vector.load %arg5[%c0_25, %c0_26] : memref<4x1xf32, #tpu.memory_space<vmem>>, vector<4x1xf32>
      tpu.vector_store %arg5[%c0_25, %c0_26], %33 {strides = array<i32>} : memref<4x1xf32, #tpu.memory_space<vmem>>, vector<4x1xf32>,
      %c0_27 = arith.constant 0 : index
      %c0_28 = arith.constant 0 : index
      %35 = vector.load %arg4[%c0_27, %c0_28] : memref<4x1xf32, #tpu.memory_space<vmem>>, vector<4x1xf32>
      tpu.vector_store %arg4[%c0_27, %c0_28], %26 {strides = array<i32>} : memref<4x1xf32, #tpu.memory_space<vmem>>, vector<4x1xf32>,
    } else {
    }
    return
  }
  func.func @transform_0(%arg0: i32, %arg1: i32, %arg2: i32) -> (i32, i32, i32) {
    %c0_i32 = arith.constant 0 : i32
    return %arg1, %arg0, %arg2 : i32, i32, i32
  }
  func.func @transform_1(%arg0: i32, %arg1: i32, %arg2: i32) -> (i32, i32) {
    %c0_i32 = arith.constant 0 : i32
    %c0_i32_0 = arith.constant 0 : i32
    return %arg0, %c0_i32 : i32, i32
  }
  func.func @transform_2(%arg0: i32, %arg1: i32, %arg2: i32) -> (i32, i32) {
    %c0_i32 = arith.constant 0 : i32
    %c0_i32_0 = arith.constant 0 : i32
    return %arg0, %c0_i32 : i32, i32
  }
}

module attributes {stable_mosaic.version = 11 : i64} {
  func.func @_bn_apply_kernel(%arg0: i32, %arg1: i32, %arg2: i32, %arg3: memref<2x4x256xf32, #tpu.memory_space<vmem>>, %arg4: memref<2x4x2xf32, #tpu.memory_space<vmem>>, %arg5: memref<2x4x256xf32, #tpu.memory_space<vmem>>) attributes {dimension_semantics = [#tpu.dimension_semantics<parallel>, #tpu.dimension_semantics<parallel>, #tpu.dimension_semantics<parallel>], iteration_bounds = array<i64: 1, 1, 1>, scalar_prefetch = 0 : i64, scratch_operands = 0 : i64, tpu.core_type = #tpu.core_type<tc>, window_params = [{transform_indices = @transform_0, window_bounds = array<i64: 2, 4, 256>}, {transform_indices = @transform_1, window_bounds = array<i64: 2, 4, 2>}, {transform_indices = @transform_2, window_bounds = array<i64: 2, 4, 256>}]} {
    %c0 = arith.constant 0 : index
    %c0_0 = arith.constant 0 : index
    %c0_1 = arith.constant 0 : index
    %0 = vector.load %arg3[%c0, %c0_0, %c0_1] : memref<2x4x256xf32, #tpu.memory_space<vmem>>, vector<2x4x256xf32>
    %c0_2 = arith.constant 0 : index
    %c0_3 = arith.constant 0 : index
    %c0_4 = arith.constant 0 : index
    %1 = vector.load %arg4[%c0_2, %c0_3, %c0_4] : memref<2x4x2xf32, #tpu.memory_space<vmem>>, vector<2x4x2xf32>
    %2 = vector.extract_strided_slice %1 {offsets = [0, 0, 0], sizes = [2, 4, 1], strides = [1, 1, 1]} : vector<2x4x2xf32> to vector<2x4x1xf32>
    %3 = vector.extract_strided_slice %1 {offsets = [0, 0, 1], sizes = [2, 4, 1], strides = [1, 1, 1]} : vector<2x4x2xf32> to vector<2x4x1xf32>
    %4 = vector.broadcast %2 : vector<2x4x1xf32> to vector<2x4x256xf32>
    %5 = arith.mulf %4, %0 : vector<2x4x256xf32>
    %6 = vector.broadcast %3 : vector<2x4x1xf32> to vector<2x4x256xf32>
    %7 = arith.addf %5, %6 : vector<2x4x256xf32>
    %c0_5 = arith.constant 0 : index
    %c0_6 = arith.constant 0 : index
    %c0_7 = arith.constant 0 : index
    %8 = vector.load %arg5[%c0_5, %c0_6, %c0_7] : memref<2x4x256xf32, #tpu.memory_space<vmem>>, vector<2x4x256xf32>
    tpu.vector_store %arg5[%c0_5, %c0_6, %c0_7], %7 {strides = array<i32>} : memref<2x4x256xf32, #tpu.memory_space<vmem>>, vector<2x4x256xf32>,
    return
  }
  func.func @transform_0(%arg0: i32, %arg1: i32, %arg2: i32) -> (i32, i32, i32) {
    %c0_i32 = arith.constant 0 : i32
    return %arg0, %arg1, %arg2 : i32, i32, i32
  }
  func.func @transform_1(%arg0: i32, %arg1: i32, %arg2: i32) -> (i32, i32, i32) {
    %c0_i32 = arith.constant 0 : i32
    %c0_i32_0 = arith.constant 0 : i32
    return %arg0, %arg1, %c0_i32 : i32, i32, i32
  }
  func.func @transform_2(%arg0: i32, %arg1: i32, %arg2: i32) -> (i32, i32, i32) {
    %c0_i32 = arith.constant 0 : i32
    return %arg0, %arg1, %arg2 : i32, i32, i32
  }
}

</mosaic_0001>

<llo_original>
// kernel: conditional_norm.3
$region0: #{conditional_norm.3}
  #allocation0 [shape = 'u32[]', space=smem, size = 0x4, offset = 0x4, fixed_abs, tag = 'smem constant byte address 0x4 - core index']
  #allocation1 [shape = 'u32[72,128]{1,0:T(1,128)}', space=vmem, size = 0x9000, scoped, tag = 'internal scratch']
  %s0 = inlined_call_operand.vmem [shape: f32[2,4,256], index: 0, kind: input, shape index: {}]
  %s1 = inlined_call_operand.vmem [shape: f32[2,4,2], index: 1, kind: input, shape index: {}]
  %s2 = inlined_call_operand.vmem [shape: f32[2,4,256], index: 2, kind: output, shape index: {}]
  %s3 = sld [smem:[#allocation0]]
  $region18: #{conditional_norm.3} parent=0
    _
  %s5 = ssub.s32 1, %s3
  %s6 = scalar_select 0, %s5, %s3
  // Predicated region
  $region2: #{conditional_norm.3} parent=0 // pred_check
    _
  $region3: #{conditional_norm.3} parent=0 // pred_check_branch
    %8 = sbr.rel (0) target = $region5
  $region4: #{conditional_norm.3} parent=0 // pred_region
    _
  $region5: #{conditional_norm.3} parent=0 // pred_fallthru
    _
  // Predicated region
  $region6: #{conditional_norm.3} parent=0 // pred_check
    _
  $region7: #{conditional_norm.3} parent=0 // pred_check_branch
    %10 = sbr.rel (0) target = $region9
  $region8: #{conditional_norm.3} parent=0 // pred_region
    _
  $region9: #{conditional_norm.3} parent=0 // pred_fallthru
    _
  %v11 = vld [vmem:[%s0] sm:$0xff]
  %v12 = vld [vmem:[%s0 + $0x8] sm:$0xff]
  %v13 = vld [vmem:[%s1] sm:$0xf]
  %v14 = vld [vmem:[%s1 + $0x4] sm:$0xf]
  %16 = vset.pattern.permute.xlu0 0
  %17 = vperm.xlu0 %16, %v13
  %v18 = vpop.permute.xlu0 %17
  %21 = vset.pattern.permute.xlu0 0
  %22 = vperm.xlu0 %21, %v14
  %v23 = vpop.permute.xlu0 %22
  %27 = vst [vmem:[#allocation1] ss:$2 sm:$0xff] %v11
  %v28 = vld.sshfl [vmem:[#allocation1] sm:$0xff pattern:$0x75316420]
  %v29 = vld.sshfl [vmem:[#allocation1 + $0x8] sm:$0xff pattern:$0x75316420]
  %s30 = scalar_lea.vmem [#allocation1], 16
  %31 = vst [vmem:[%s30] ss:$2 sm:$0xff] %v12
  %v32 = vld.sshfl [vmem:[#allocation1 + $0x10] sm:$0xff pattern:$0x75316420]
  %v33 = vld.sshfl [vmem:[#allocation1 + $0x18] sm:$0xff pattern:$0x75316420]
  %v38 = vmul.f32 %v18, %v28
  %v39 = vmul.f32 %v18, %v29
  %v40 = vmul.f32 %v23, %v32
  %v41 = vmul.f32 %v23, %v33
  %42 = vset.pattern.permute.xlu0 1
  %43 = vperm.xlu0 %42, %v13
  %v44 = vpop.permute.xlu0 %43
  %46 = vset.pattern.permute.xlu0 1
  %47 = vperm.xlu0 %46, %v14
  %v48 = vpop.permute.xlu0 %47
  %v50 = vadd.f32 %v38, %v44
  %v51 = vadd.f32 %v39, %v44
  %v52 = vadd.f32 %v40, %v48
  %v53 = vadd.f32 %v41, %v48
  %v58 = vrot.slane %v51, 4
  %v59 = vrot.slane %v53, 4
  %vm60 = vcmask 1043456
  %v61 = vsel %vm60, %v50, %v58
  %v62 = vsel %vm60, %v52, %v59
  %65 = vst [vmem:[%s2] sm:$0xff] %v61
  %66 = vst [vmem:[%s2 + $0x8] sm:$0xff] %v62
  // Predicated region
  $region10: #{conditional_norm.3} parent=0 // pred_check
    _
  $region11: #{conditional_norm.3} parent=0 // pred_check_branch
    %68 = sbr.rel (0) target = $region13
  $region12: #{conditional_norm.3} parent=0 // pred_region
    _
  $region13: #{conditional_norm.3} parent=0 // pred_fallthru
    _
  // Predicated region
  $region14: #{conditional_norm.3} parent=0 // pred_check
    _
  $region15: #{conditional_norm.3} parent=0 // pred_check_branch
    %70 = sbr.rel (0) target = $region17
  $region16: #{conditional_norm.3} parent=0 // pred_region
    _
  $region17: #{conditional_norm.3} parent=0 // pred_fallthru
    _

// kernel: conditional_norm.2
$region0: #{conditional_norm.2}
  #allocation0 [shape = 'u32[]', space=smem, size = 0x4, offset = 0x4, fixed_abs, tag = 'smem constant byte address 0x4 - core index']
  #allocation1 [shape = 'u32[72,128]{1,0:T(1,128)}', space=vmem, size = 0x9000, scoped, tag = 'internal scratch']
  %s0 = inlined_call_operand.vmem [shape: f32[2,4,256], index: 0, kind: input, shape index: {}]
  %s1 = inlined_call_operand.vmem [shape: f32[4,1], index: 1, kind: output, shape index: {0}]
  %s2 = inlined_call_operand.vmem [shape: f32[4,1], index: 2, kind: output, shape index: {1}]
  %3 = xla_tuple %s1, %s2
  %s4 = sld [smem:[#allocation0]]
  $region30: #{conditional_norm.2} parent=0
    _
  %s6 = ssub.s32 1, %s4
  %s7 = scalar_select 0, %s6, %s4
  // Predicated region
  $region2: #{conditional_norm.2} parent=0 // pred_check
    _
  $region3: #{conditional_norm.2} parent=0 // pred_check_branch
    %9 = sbr.rel (0) target = $region5
  $region4: #{conditional_norm.2} parent=0 // pred_region
    _
  $region5: #{conditional_norm.2} parent=0 // pred_fallthru
    _
  %p10 = scmp.eq.s32.totalorder 0, 0
  %p11 = scmp.eq.s32.totalorder 0, 0
  %p12 = pnand %p10, %p11
  %p13 = pneg %p12
  // Predicated region
  $region6: #{conditional_norm.2} parent=0 // pred_check
    _
  $region7: #{conditional_norm.2} parent=0 // pred_check_branch
    %15 = sbr.rel (%p12) target = $region9
  $region8: #{conditional_norm.2} parent=0 // pred_region
    %vm16 = vcmask 3072
    %17 = vst.msk [vmem:[%s1] sm:$0xf] %vm16, 0.0
    %18 = vst.msk [vmem:[%s2] sm:$0xf] %vm16, 0.0
  $region9: #{conditional_norm.2} parent=0 // pred_fallthru
    _
  %v19 = vld [vmem:[%s0] sm:$0xff]
  %v20 = vld [vmem:[%s0 + $0x8] sm:$0xff]
  %v21 = vld [vmem:[%s1] sm:$0xf]
  %24 = vst [vmem:[#allocation1] ss:$2 sm:$0xff] %v19
  %v25 = vld.sshfl [vmem:[#allocation1] sm:$0xff pattern:$0x75316420]
  %v26 = vld.sshfl [vmem:[#allocation1 + $0x8] sm:$0xff pattern:$0x75316420]
  %s27 = scalar_lea.vmem [#allocation1], 16
  %28 = vst [vmem:[%s27] ss:$2 sm:$0xff] %v20
  %v29 = vld.sshfl [vmem:[#allocation1 + $0x10] sm:$0xff pattern:$0x75316420]
  %v30 = vld.sshfl [vmem:[#allocation1 + $0x18] sm:$0xff pattern:$0x75316420]
  %vm35 = vcmask 1043456
  %v36 = vsel %vm35, %v25, 0.0
  %v37 = vsel %vm35, %v26, 0.0
  %v38 = vadd.f32 %v36, %v37
  %39 = vadd.xlane.f32.xlu0 %v38
  %v40 = vpop.xlane.xlu0 %39
  %v41 = vsel %vm35, %v29, 0.0
  %v42 = vsel %vm35, %v30, 0.0
  %v43 = vadd.f32 %v41, %v42
  %44 = vadd.xlane.f32.xlu0 %v43
  %v45 = vpop.xlane.xlu0 %44
  %v46 = vsel %vm35, %v40, 0.0
  %v47 = vsel %vm35, %v45, 0.0
  %v48 = vadd.f32 %v46, %v47
  %v49 = vadd.f32 %v21, %v48
  %vm50 = vcmask 3072
  %51 = vst.msk [vmem:[%s1] sm:$0xf] %vm50, %v49
  %v52 = vld [vmem:[%s2] sm:$0xf]
  %v53 = vmul.f32 %v19, %v19
  %v54 = vmul.f32 %v20, %v20
  %57 = vst [vmem:[#allocation1] ss:$2 sm:$0xff] %v53
  %v58 = vld.sshfl [vmem:[#allocation1] sm:$0xff pattern:$0x75316420]
  %v59 = vld.sshfl [vmem:[#allocation1 + $0x8] sm:$0xff pattern:$0x75316420]
  %s60 = scalar_lea.vmem [#allocation1], 16
  %61 = vst [vmem:[%s60] ss:$2 sm:$0xff] %v54
  %v62 = vld.sshfl [vmem:[#allocation1 + $0x10] sm:$0xff pattern:$0x75316420]
  %v63 = vld.sshfl [vmem:[#allocation1 + $0x18] sm:$0xff pattern:$0x75316420]
  %v68 = vsel %vm35, %v58, 0.0
  %v69 = vsel %vm35, %v59, 0.0
  %v70 = vadd.f32 %v68, %v69
  %71 = vadd.xlane.f32.xlu0 %v70
  %v72 = vpop.xlane.xlu0 %71
  %v73 = vsel %vm35, %v62, 0.0
  %v74 = vsel %vm35, %v63, 0.0
  %v75 = vadd.f32 %v73, %v74
  %76 = vadd.xlane.f32.xlu0 %v75
  %v77 = vpop.xlane.xlu0 %76
  %v78 = vsel %vm35, %v72, 0.0
  %v79 = vsel %vm35, %v77, 0.0
  %v80 = vadd.f32 %v78, %v79
  %v81 = vadd.f32 %v52, %v80
  %82 = vst.msk [vmem:[%s2] sm:$0xf] %vm50, %v81
  // Predicated region
  $region10: #{conditional_norm.2} parent=0 // pred_check
    _
  $region11: #{conditional_norm.2} parent=0 // pred_check_branch
    %84 = sbr.rel (%p12) target = $region13
  $region12: #{conditional_norm.2} parent=0 // pred_region
    %v85 = vld [vmem:[%s1] sm:$0xf]
    %v86 = vrcp.pop 512.0
    %v87 = vmul.f32 512.0, %v86
    %v88 = vsub.f32 1.0, %v87
    %v89 = vmul.f32 %v86, %v88
    %v90 = vadd.f32 %v86, %v89
    %vm91 = vweird.f32 %v86
    %v92 = vsel %vm91, %v86, %v90
    %v93 = vmul.f32 %v85, %v92
    %v94 = vld [vmem:[%s2] sm:$0xf]
    %v95 = vmul.f32 %v94, %v92
    %v96 = vmul.f32 %v93, %v93
    %v97 = vsub.f32 %v95, %v96
    %v98 = vmax.f32 %v97, 0.0
    %99 = vst.msk [vmem:[%s2] sm:$0xf] %vm50, %v98
    %100 = vst.msk [vmem:[%s1] sm:$0xf] %vm50, %v93
  $region13: #{conditional_norm.2} parent=0 // pred_fallthru
    _
  // Predicated region
  $region14: #{conditional_norm.2} parent=0 // pred_check
    _
  $region15: #{conditional_norm.2} parent=0 // pred_check_branch
    %102 = sbr.rel (0) target = $region17
  $region16: #{conditional_norm.2} parent=0 // pred_region
    _
  $region17: #{conditional_norm.2} parent=0 // pred_fallthru
    _
  // Predicated region
  $region18: #{conditional_norm.2} parent=0 // pred_check
    _
  $region19: #{conditional_norm.2} parent=0 // pred_check_branch
    %104 = sbr.rel (0) target = $region21
  $region20: #{conditional_norm.2} parent=0 // pred_region
    _
  $region21: #{conditional_norm.2} parent=0 // pred_fallthru
    _
  // Predicated region
  $region22: #{conditional_norm.2} parent=0 // pred_check
    _
  $region23: #{conditional_norm.2} parent=0 // pred_check_branch
    %106 = sbr.rel (0) target = $region25
  $region24: #{conditional_norm.2} parent=0 // pred_region
    _
  $region25: #{conditional_norm.2} parent=0 // pred_fallthru
    _
  // Predicated region
  $region26: #{conditional_norm.2} parent=0 // pred_check
    _
  $region27: #{conditional_norm.2} parent=0 // pred_check_branch
    %108 = sbr.rel (0) target = $region29
  $region28: #{conditional_norm.2} parent=0 // pred_region
    _
  $region29: #{conditional_norm.2} parent=0 // pred_fallthru
    _

</llo_original>
